<compile_context>
chip_gen: v5e
topology: v5e:2x2
jax: 0.10.0
libtpu: 0.0.40
codegen_flags: <defaults>
</compile_context>

<pallas_src>
import math

import numpy as np
import jax
import jax.numpy as jnp
from jax.experimental import pallas as pl
from jax.experimental.pallas import tpu as pltpu


_LANE = 128        # lane width: pad feature dims to this for lane-dense stores
_ROW_ALIGN = 16    # bf16 sublane packing tile -> keep row tiles multiples of 16


def _round_up(x: int, m: int) -> int:
    return ((x + m - 1) // m) * m


def _vmem_cap_bytes() -> int:
    """Generation-aware VMEM cap: 128 MiB parts (v5e/v6e) get more headroom
    than 64 MiB parts (v7x / unknown)."""
    try:
        kind = jax.devices()[0].device_kind.lower()
    except Exception:
        kind = ""
    if "v5" in kind or "v6" in kind:
        return 80 << 20
    return 40 << 20


def make_mlp_kernel():
    lrelu_alpha = 0.2
    lrelu_gain = float(np.sqrt(2.0))   # bias_act def_gain for 'lrelu'
    pos_scale = lrelu_gain             # lrelu gain fused into the select consts
    neg_scale = lrelu_alpha * lrelu_gain

    def mlp_kernel(x_ref, w1t_ref, b1_ref, w2t_ref, b2_ref, o_ref):
        # fc1 on the MXU: bf16 operands, f32 accumulation. weight_gain is
        # already folded into w1t -> no per-tile VPU gain multiply here.
        h = jnp.dot(x_ref[...], w1t_ref[...],
                    preferred_element_type=jnp.float32)       # (tn, H_p) f32
        z = h + b1_ref[...]
        # leaky_relu(z, 0.2) * sqrt(2), gain fused into the select constants.
        a = z * jnp.where(z >= 0.0, pos_scale, neg_scale)

        # fc2 (linear + bias); weight_gain folded into w2t. Output is written
        # to a lane-dense (multiple-of-128) last dim -> unmasked stores.
        y = jnp.dot(a.astype(w2t_ref.dtype), w2t_ref[...],
                    preferred_element_type=jnp.float32)       # (tn, Cout_p)
        o_ref[...] = y + b2_ref[...]

    return mlp_kernel


def mlp_forward(x, w1, b1, w2, b2, *, tile_n=None):
    """x: (N, Cin) f32. w1: (H, Cin), b1: (H,), w2: (Cout, H), b2: (Cout,)."""
    N, Cin = x.shape
    H = w1.shape[0]
    Cout = w2.shape[0]

    # weight_gain = lr_multiplier / sqrt(in_features), lr_multiplier = 1
    w1_gain = 1.0 / math.sqrt(Cin)
    w2_gain = 1.0 / math.sqrt(H)

    # Lane-dense padding of the hidden / output feature dims.
    H_p = _round_up(H, _LANE)
    Cout_p = _round_up(Cout, _LANE)

    # Row tile: one fat step for small N (avoids per-step ~0.35us overhead and
    # a padded tail); >=512-row tiles for large N, capped so the f32 (tn, H_p)
    # hidden working set stays at a few MiB.
    n_min = _round_up(max(N, _ROW_ALIGN), _ROW_ALIGN)
    if tile_n is None:
        if n_min <= 1024:
            tn = n_min
        else:
            tn = 512
            hid_cap = max(_ROW_ALIGN, (4 << 20) // (H_p * 4))
            tn = min(tn, _round_up(hid_cap, _ROW_ALIGN))
    else:
        tn = min(_round_up(tile_n, _ROW_ALIGN), n_min)
    n_pad = tn * pl.cdiv(N, tn)
    grid = (n_pad // tn,)

    # bf16 MXU operands; rows zero-padded to the tile multiple.
    x_p = jnp.pad(x, ((0, n_pad - N), (0, 0))) if n_pad != N else x
    x_p = x_p.astype(jnp.bfloat16)

    # Pre-transpose + fold weight gains ONCE at trace time (weights are
    # grid-invariant / resident), pad to lane-dense shapes, cast to bf16.
    w1t = jnp.pad(jnp.transpose(w1) * w1_gain,
                  ((0, 0), (0, H_p - H))).astype(jnp.bfloat16)        # (Cin, H_p)
    w2t = jnp.pad(jnp.transpose(w2) * w2_gain,
                  ((0, H_p - H), (0, Cout_p - Cout))).astype(jnp.bfloat16)
    b1_2d = jnp.pad(b1.reshape(1, H).astype(jnp.float32),
                    ((0, 0), (0, H_p - H)))                           # (1, H_p)
    b2_2d = jnp.pad(b2.reshape(1, Cout).astype(jnp.float32),
                    ((0, 0), (0, Cout_p - Cout)))                     # (1, Cout_p)

    kernel = make_mlp_kernel()

    # VMEM footprint: double-buffered x / out streams, resident (possibly
    # double-buffered by Mosaic) weights + biases, f32 hidden temporaries.
    vmem_est = (
        2 * tn * Cin * 2                       # bf16 x tiles (pipelined)
        + 2 * tn * Cout_p * 4                  # f32 out tiles (pipelined)
        + 2 * (Cin * H_p + H_p * Cout_p) * 2   # bf16 weights
        + 2 * (H_p + Cout_p) * 4               # f32 biases
        + 3 * tn * H_p * 4 + tn * Cout_p * 4   # f32 hidden / activation / result
    )
    vmem_limit = int(min(max(vmem_est + (2 << 20), 16 << 20), _vmem_cap_bytes()))

    flops = 2 * n_pad * (Cin * H_p + H_p * Cout_p)
    bytes_accessed = (
        2 * (n_pad * Cin + Cin * H_p + H_p * Cout_p)   # bf16 x + weights
        + 4 * (H_p + Cout_p + n_pad * Cout_p)          # f32 biases + out
    )

    # TODO(synk): for very wide hidden layers (H_p >= ~2048) tile H inside the
    # kernel with a VMEM accumulator instead of only capping the row tile.
    out = pl.pallas_call(
        kernel,
        out_shape=jax.ShapeDtypeStruct((n_pad, Cout_p), jnp.float32),
        grid=grid,
        in_specs=[
            pl.BlockSpec((tn, Cin), lambda i: (i, 0)),       # streamed x rows
            pl.BlockSpec((Cin, H_p), lambda i: (0, 0)),      # invariant W1^T*g1
            pl.BlockSpec((1, H_p), lambda i: (0, 0)),        # invariant b1
            pl.BlockSpec((H_p, Cout_p), lambda i: (0, 0)),   # invariant W2^T*g2
            pl.BlockSpec((1, Cout_p), lambda i: (0, 0)),     # invariant b2
        ],
        out_specs=pl.BlockSpec((tn, Cout_p), lambda i: (i, 0)),
        compiler_params=pltpu.CompilerParams(
            dimension_semantics=("parallel",),
            vmem_limit_bytes=vmem_limit,
        ),
        cost_estimate=pl.CostEstimate(
            flops=flops, transcendentals=0, bytes_accessed=bytes_accessed
        ),
    )(x_p, w1t, b1_2d, w2t, b2_2d)

    # Slice off row padding and the lane-dense column padding.
    return out[:N, :Cout]


def mlp_reference(x, w1, b1, w2, b2):
    """Pure-JAX f32 reference of the PyTorch forward for correctness checking."""
    Cin = x.shape[-1]
    H = w1.shape[0]
    h = x @ (w1 * (1.0 / math.sqrt(Cin))).T
    z = h + b1
    h = jnp.where(z >= 0, z, 0.2 * z) * np.sqrt(2.0)
    y = h @ (w2 * (1.0 / math.sqrt(H))).T + b2
    return y


if __name__ == "__main__":
    # Small shapes consistent with the module: token features on the last axis.
    N = 200
    IN_FEATURES = 32
    HIDDEN = 64
    OUT_FEATURES = 32  # out_features defaults to in_features

    key = jax.random.PRNGKey(0)
    kx, kw1, kw2 = jax.random.split(key, 3)

    x = jax.random.normal(kx, (N, IN_FEATURES), dtype=jnp.float32)

    # Parameter init mirrors the PyTorch __init__:
    #   weight = randn(out, in) / lr_multiplier (=1);  bias = full(out, 0.0)
    w1 = jax.random.normal(kw1, (HIDDEN, IN_FEATURES), dtype=jnp.float32)
    b1 = jnp.zeros((HIDDEN,), dtype=jnp.float32)
    w2 = jax.random.normal(kw2, (OUT_FEATURES, HIDDEN), dtype=jnp.float32)
    b2 = jnp.zeros((OUT_FEATURES,), dtype=jnp.float32)

    out = mlp_forward(x, w1, b1, w2, b2)
    out = jax.block_until_ready(out)

    ref = mlp_reference(x, w1, b1, w2, b2)
    # bf16 MXU operands -> looser tolerance than the previous f32-only kernel.
    np.testing.assert_allclose(np.asarray(out), np.asarray(ref),
                               rtol=5e-2, atol=5e-2)

    print("KERNEL_OK")
</pallas_src>

<mosaic_0001>
module attributes {stable_mosaic.version = 11 : i64} {
  func.func @mlp_kernel(%arg0: i32, %arg1: memref<208x32xbf16, #tpu.memory_space<vmem>>, %arg2: memref<32x128xbf16, #tpu.memory_space<vmem>>, %arg3: memref<1x128xf32, #tpu.memory_space<vmem>>, %arg4: memref<128x128xbf16, #tpu.memory_space<vmem>>, %arg5: memref<1x128xf32, #tpu.memory_space<vmem>>, %arg6: memref<208x128xf32, #tpu.memory_space<vmem>>) attributes {dimension_semantics = [#tpu.dimension_semantics<parallel>], iteration_bounds = array<i64: 1>, scalar_prefetch = 0 : i64, scratch_operands = 0 : i64, tpu.core_type = #tpu.core_type<tc>, window_params = [{transform_indices = @transform_0, window_bounds = array<i64: 208, 32>}, {pipeline_mode = #tpu.pipeline_mode<synchronous>, transform_indices = @transform_1, window_bounds = array<i64: 32, 128>}, {pipeline_mode = #tpu.pipeline_mode<synchronous>, transform_indices = @transform_2, window_bounds = array<i64: 1, 128>}, {pipeline_mode = #tpu.pipeline_mode<synchronous>, transform_indices = @transform_3, window_bounds = array<i64: 128, 128>}, {pipeline_mode = #tpu.pipeline_mode<synchronous>, transform_indices = @transform_4, window_bounds = array<i64: 1, 128>}, {transform_indices = @transform_5, window_bounds = array<i64: 208, 128>}]} {
    %c0 = arith.constant 0 : index
    %c0_0 = arith.constant 0 : index
    %0 = vector.load %arg1[%c0, %c0_0] : memref<208x32xbf16, #tpu.memory_space<vmem>>, vector<208x32xbf16>
    %c0_1 = arith.constant 0 : index
    %c0_2 = arith.constant 0 : index
    %1 = vector.load %arg2[%c0_1, %c0_2] : memref<32x128xbf16, #tpu.memory_space<vmem>>, vector<32x128xbf16>
    %cst = arith.constant dense<0.000000e+00> : vector<208x128xf32>
    %2 = tpu.matmul %0, %1, %cst {dimension_numbers = #tpu.dot_dimension_numbers<[1], [0], [0], [1], [0, 0, 1, 1], [], []>} : vector<208x32xbf16>, vector<32x128xbf16>, vector<208x128xf32> -> vector<208x128xf32>
    %c0_3 = arith.constant 0 : index
    %c0_4 = arith.constant 0 : index
    %3 = vector.load %arg3[%c0_3, %c0_4] : memref<1x128xf32, #tpu.memory_space<vmem>>, vector<1x128xf32>
    %4 = vector.broadcast %3 : vector<1x128xf32> to vector<208x128xf32>
    %5 = arith.addf %2, %4 : vector<208x128xf32>
    %cst_5 = arith.constant 0.000000e+00 : f32
    %6 = vector.broadcast %cst_5 : f32 to vector<208x128xf32>
    %7 = arith.cmpf oge, %5, %6 : vector<208x128xf32>
    %cst_6 = arith.constant 1.41421354 : f32
    %cst_7 = arith.constant 0.282842726 : f32
    %8 = vector.broadcast %cst_6 : f32 to vector<208x128xf32>
    %9 = vector.broadcast %cst_7 : f32 to vector<208x128xf32>
    %10 = arith.select %7, %8, %9 : vector<208x128xi1>, vector<208x128xf32>
    %11 = arith.mulf %5, %10 : vector<208x128xf32>
    %12 = arith.truncf %11 : vector<208x128xf32> to vector<208x128xbf16>
    %c0_8 = arith.constant 0 : index
    %c0_9 = arith.constant 0 : index
    %13 = vector.load %arg4[%c0_8, %c0_9] : memref<128x128xbf16, #tpu.memory_space<vmem>>, vector<128x128xbf16>
    %cst_10 = arith.constant dense<0.000000e+00> : vector<208x128xf32>
    %14 = tpu.matmul %12, %13, %cst_10 {dimension_numbers = #tpu.dot_dimension_numbers<[1], [0], [0], [1], [0, 0, 1, 1], [], []>} : vector<208x128xbf16>, vector<128x128xbf16>, vector<208x128xf32> -> vector<208x128xf32>
    %c0_11 = arith.constant 0 : index
    %c0_12 = arith.constant 0 : index
    %15 = vector.load %arg5[%c0_11, %c0_12] : memref<1x128xf32, #tpu.memory_space<vmem>>, vector<1x128xf32>
    %16 = vector.broadcast %15 : vector<1x128xf32> to vector<208x128xf32>
    %17 = arith.addf %14, %16 : vector<208x128xf32>
    %c0_13 = arith.constant 0 : index
    %c0_14 = arith.constant 0 : index
    %18 = vector.load %arg6[%c0_13, %c0_14] : memref<208x128xf32, #tpu.memory_space<vmem>>, vector<208x128xf32>
    tpu.vector_store %arg6[%c0_13, %c0_14], %17 {strides = array<i32>} : memref<208x128xf32, #tpu.memory_space<vmem>>, vector<208x128xf32>,
    return
  }
  func.func @transform_0(%arg0: i32) -> (i32, i32) {
    %c0_i32 = arith.constant 0 : i32
    %c0_i32_0 = arith.constant 0 : i32
    return %arg0, %c0_i32 : i32, i32
  }
  func.func @transform_1(%arg0: i32) -> (i32, i32) {
    %c0_i32 = arith.constant 0 : i32
    %c0_i32_0 = arith.constant 0 : i32
    %c0_i32_1 = arith.constant 0 : i32
    return %c0_i32, %c0_i32_0 : i32, i32
  }
  func.func @transform_2(%arg0: i32) -> (i32, i32) {
    %c0_i32 = arith.constant 0 : i32
    %c0_i32_0 = arith.constant 0 : i32
    %c0_i32_1 = arith.constant 0 : i32
    return %c0_i32, %c0_i32_0 : i32, i32
  }
  func.func @transform_3(%arg0: i32) -> (i32, i32) {
    %c0_i32 = arith.constant 0 : i32
    %c0_i32_0 = arith.constant 0 : i32
    %c0_i32_1 = arith.constant 0 : i32
    return %c0_i32, %c0_i32_0 : i32, i32
  }
  func.func @transform_4(%arg0: i32) -> (i32, i32) {
    %c0_i32 = arith.constant 0 : i32
    %c0_i32_0 = arith.constant 0 : i32
    %c0_i32_1 = arith.constant 0 : i32
    return %c0_i32, %c0_i32_0 : i32, i32
  }
  func.func @transform_5(%arg0: i32) -> (i32, i32) {
    %c0_i32 = arith.constant 0 : i32
    %c0_i32_0 = arith.constant 0 : i32
    return %arg0, %c0_i32 : i32, i32
  }
}

</mosaic_0001>

<llo_original>
// kernel: tpu_custom_call.1
$region0: #{tpu_custom_call.1}
  #allocation0 [shape = 'u32[]', space=smem, size = 0x4, offset = 0x4, fixed_abs, tag = 'smem constant byte address 0x4 - core index']
  #allocation1 [shape = 'u32[72,128]{1,0:T(1,128)}', space=vmem, size = 0x9000, scoped, tag = 'internal scratch']
  %s0 = inlined_call_operand.vmem [shape: bf16[208,32], index: 0, kind: input, shape index: {}]
  %s1 = inlined_call_operand.vmem [shape: bf16[32,128], index: 1, kind: input, shape index: {}]
  %s2 = inlined_call_operand.vmem [shape: f32[1,128], index: 2, kind: input, shape index: {}]
  %s3 = inlined_call_operand.vmem [shape: bf16[128,128], index: 3, kind: input, shape index: {}]
  %s4 = inlined_call_operand.vmem [shape: f32[1,128], index: 4, kind: input, shape index: {}]
  %s5 = inlined_call_operand.hbm [shape: f32[208,128], index: 5, kind: output, shape index: {}]
  %s6 = sld [smem:[#allocation0]]
  $region30: #{tpu_custom_call.1} parent=0
    _
  %s8 = ssub.s32 1, %s6
  %s9 = scalar_select 0, %s8, %s6
  $region1: #{tpu_custom_call.1} parent=0
    #allocation2 [shape = 'u8[106496]{0}', space=vmem, size = 0x1a000, scoped, tag = 'output window, operand 0, single buffered']
    #allocation3 [shape = 's32[1]{0}', space=sflag, size = 0x4, scoped, tag = 'scoped memory for tpu_custom_call.1']
    %10 = vsyncpa [#allocation3], 0
    // Predicated region
    $region2: #{tpu_custom_call.1} parent=1 // pred_check
      _
    $region3: #{tpu_custom_call.1} parent=1 // pred_check_branch
      %12 = sbr.rel (0) target = $region5
    $region4: #{tpu_custom_call.1} parent=1 // pred_region
      _
    $region5: #{tpu_custom_call.1} parent=1 // pred_fallthru
      _
    // Predicated region
    $region6: #{tpu_custom_call.1} parent=1 // pred_check
      _
    $region7: #{tpu_custom_call.1} parent=1 // pred_check_branch
      %14 = sbr.rel (0) target = $region9
    $region8: #{tpu_custom_call.1} parent=1 // pred_region
      _
    $region9: #{tpu_custom_call.1} parent=1 // pred_fallthru
      _
    // Predicated region
    $region10: #{tpu_custom_call.1} parent=1 // pred_check
      _
    $region11: #{tpu_custom_call.1} parent=1 // pred_check_branch
      %16 = sbr.rel (0) target = $region13
    $region12: #{tpu_custom_call.1} parent=1 // pred_region
      _
    $region13: #{tpu_custom_call.1} parent=1 // pred_fallthru
      _
    // Predicated region
    $region14: #{tpu_custom_call.1} parent=1 // pred_check
      _
    $region15: #{tpu_custom_call.1} parent=1 // pred_check_branch
      %18 = sbr.rel (0) target = $region17
    $region16: #{tpu_custom_call.1} parent=1 // pred_region
      _
    $region17: #{tpu_custom_call.1} parent=1 // pred_fallthru
      _
    // Predicated region
    $region18: #{tpu_custom_call.1} parent=1 // pred_check
      _
    $region19: #{tpu_custom_call.1} parent=1 // pred_check_branch
      %20 = sbr.rel (0) target = $region21
    $region20: #{tpu_custom_call.1} parent=1 // pred_region
      _
    $region21: #{tpu_custom_call.1} parent=1 // pred_fallthru
      _
    %v22 = vld [vmem:[%s0] sm:$0xf]
    %v23 = vld [vmem:[%s0 + $0x4] sm:$0xf]
    %v24 = vld [vmem:[%s0 + $0x8] sm:$0xf]
    %v25 = vld [vmem:[%s0 + $0xc] sm:$0xf]
    %v26 = vld [vmem:[%s0 + $0x10] sm:$0xf]
    %v27 = vld [vmem:[%s0 + $0x14] sm:$0xf]
    %v28 = vld [vmem:[%s0 + $0x18] sm:$0xf]
    %v29 = vld [vmem:[%s0 + $0x1c] sm:$0xf]
    %v30 = vld [vmem:[%s0 + $0x20] sm:$0xf]
    %v31 = vld [vmem:[%s0 + $0x24] sm:$0xf]
    %v32 = vld [vmem:[%s0 + $0x28] sm:$0xf]
    %v33 = vld [vmem:[%s0 + $0x2c] sm:$0xf]
    %v34 = vld [vmem:[%s0 + $0x30] sm:$0xf]
    %v35 = vld [vmem:[%s0 + $0x34] sm:$0xf]
    %v36 = vld [vmem:[%s0 + $0x38] sm:$0xf]
    %v37 = vld [vmem:[%s0 + $0x3c] sm:$0xf]
    %v38 = vld [vmem:[%s0 + $0x40] sm:$0xf]
    %v39 = vld [vmem:[%s0 + $0x44] sm:$0xf]
    %v40 = vld [vmem:[%s0 + $0x48] sm:$0xf]
    %v41 = vld [vmem:[%s0 + $0x4c] sm:$0xf]
    %v42 = vld [vmem:[%s0 + $0x50] sm:$0xf]
    %v43 = vld [vmem:[%s0 + $0x54] sm:$0xf]
    %v44 = vld [vmem:[%s0 + $0x58] sm:$0xf]
    %v45 = vld [vmem:[%s0 + $0x5c] sm:$0xf]
    %v46 = vld [vmem:[%s0 + $0x60] sm:$0xf]
    %v47 = vld [vmem:[%s0 + $0x64] sm:$0xf]
    %v48 = vld [vmem:[%s1] sm:$0xf]
    %v49 = vld [vmem:[%s1 + $0x4] sm:$0xf]
    %v50 = vld [vmem:[%s1 + $0x8] sm:$0xf]
    %v51 = vld [vmem:[%s1 + $0xc] sm:$0xf]
    %v52 = vld [vmem:[%s2] sm:$0x1]
    %v54 = vperm.slane %v52, 0
    %v82 = vunpack.c.l.b16 %v22
    %v83 = vunpack.c.l.b16 %v23
    %v84 = vunpack.c.l.b16 %v24
    %v85 = vunpack.c.l.b16 %v25
    %v86 = vunpack.c.l.b16 %v26
    %v87 = vunpack.c.l.b16 %v27
    %v88 = vunpack.c.l.b16 %v28
    %v89 = vunpack.c.l.b16 %v29
    %v90 = vunpack.c.l.b16 %v30
    %v91 = vunpack.c.l.b16 %v31
    %v92 = vunpack.c.l.b16 %v32
    %v93 = vunpack.c.l.b16 %v33
    %v94 = vunpack.c.l.b16 %v34
    %v95 = vunpack.c.l.b16 %v35
    %v96 = vunpack.c.l.b16 %v36
    %v97 = vunpack.c.l.b16 %v37
    %v98 = vunpack.c.l.b16 %v38
    %v99 = vunpack.c.l.b16 %v39
    %v100 = vunpack.c.l.b16 %v40
    %v101 = vunpack.c.l.b16 %v41
    %v102 = vunpack.c.l.b16 %v42
    %v103 = vunpack.c.l.b16 %v43
    %v104 = vunpack.c.l.b16 %v44
    %v105 = vunpack.c.l.b16 %v45
    %v106 = vunpack.c.l.b16 %v46
    %v107 = vunpack.c.l.b16 %v47
    %v108 = vpack.c.b16 %v83, %v82
    %v109 = vpack.c.b16 %v85, %v84
    %v110 = vpack.c.b16 %v87, %v86
    %v111 = vpack.c.b16 %v89, %v88
    %v112 = vpack.c.b16 %v91, %v90
    %v113 = vpack.c.b16 %v93, %v92
    %v114 = vpack.c.b16 %v95, %v94
    %v115 = vpack.c.b16 %v97, %v96
    %v116 = vpack.c.b16 %v99, %v98
    %v117 = vpack.c.b16 %v101, %v100
    %v118 = vpack.c.b16 %v103, %v102
    %v119 = vpack.c.b16 %v105, %v104
    %v120 = vpack.c.b16 %v107, %v106
    %v125 = vunpack.c.l.b16 %v48
    %v126 = vunpack.c.l.b16 %v49
    %v127 = vunpack.c.l.b16 %v50
    %v128 = vunpack.c.l.b16 %v51
    %v129 = vpack.c.b16 %v126, %v125
    %v130 = vpack.c.b16 %v128, %v127
    %vm133 = vcmask 261120
    %v135 = vsel %vm133, %v108, 0
    %v138 = vsel %vm133, %v109, 0
    %v141 = vsel %vm133, %v110, 0
    %v144 = vsel %vm133, %v111, 0
    %v147 = vsel %vm133, %v112, 0
    %v150 = vsel %vm133, %v113, 0
    %v153 = vsel %vm133, %v114, 0
    %v156 = vsel %vm133, %v115, 0
    %v159 = vsel %vm133, %v116, 0
    %v162 = vsel %vm133, %v117, 0
    %v165 = vsel %vm133, %v118, 0
    %v168 = vsel %vm133, %v119, 0
    %v171 = vsel %vm133, %v120, 0
    %173 = vmatpush.bf16.msra.mxu0 0
    %174 = vmatpush.bf16.msra.mxu0 0
    %175 = vmatpush.bf16.msra.mxu0 0
    %176 = vmatpush.bf16.msra.mxu0 0
    %177 = vmatpush.bf16.msra.mxu0 0
    %178 = vmatpush.bf16.msra.mxu0 0
    %179 = vmatpush.bf16.msra.mxu0 %v130
    %180 = vmatpush.bf16.msra.mxu0 %v129
    %181 = vmatmul.bf16.gmra.mxu0 %v135
    %v182 = vpop.f32.mrf.mxu0
    %v183 = vadd.f32 %v54, %v182
    %v184 = vpop.f32.mrf.mxu0
    %v185 = vadd.f32 %v54, %v184
    %186 = vmatmul.bf16.gmra.mxu0 %v138
    %v187 = vpop.f32.mrf.mxu0
    %v188 = vadd.f32 %v54, %v187
    %v189 = vpop.f32.mrf.mxu0
    %v190 = vadd.f32 %v54, %v189
    %191 = vmatmul.bf16.gmra.mxu0 %v141
    %v192 = vpop.f32.mrf.mxu0
    %v193 = vadd.f32 %v54, %v192
    %v194 = vpop.f32.mrf.mxu0
    %v195 = vadd.f32 %v54, %v194
    %196 = vmatmul.bf16.gmra.mxu0 %v144
    %v197 = vpop.f32.mrf.mxu0
    %v198 = vadd.f32 %v54, %v197
    %v199 = vpop.f32.mrf.mxu0
    %v200 = vadd.f32 %v54, %v199
    %201 = vmatmul.bf16.gmra.mxu0 %v147
    %v202 = vpop.f32.mrf.mxu0
    %v203 = vadd.f32 %v54, %v202
    %v204 = vpop.f32.mrf.mxu0
    %v205 = vadd.f32 %v54, %v204
    %206 = vmatmul.bf16.gmra.mxu0 %v150
    %v207 = vpop.f32.mrf.mxu0
    %v208 = vadd.f32 %v54, %v207
    %v209 = vpop.f32.mrf.mxu0
    %v210 = vadd.f32 %v54, %v209
    %211 = vmatmul.bf16.gmra.mxu0 %v153
    %v212 = vpop.f32.mrf.mxu0
    %v213 = vadd.f32 %v54, %v212
    %v214 = vpop.f32.mrf.mxu0
    %v215 = vadd.f32 %v54, %v214
    %216 = vmatmul.bf16.gmra.mxu0 %v156
    %v217 = vpop.f32.mrf.mxu0
    %v218 = vadd.f32 %v54, %v217
    %v219 = vpop.f32.mrf.mxu0
    %v220 = vadd.f32 %v54, %v219
    %221 = vmatmul.bf16.gmra.mxu0 %v159
    %v222 = vpop.f32.mrf.mxu0
    %v223 = vadd.f32 %v54, %v222
    %v224 = vpop.f32.mrf.mxu0
    %v225 = vadd.f32 %v54, %v224
    %226 = vmatmul.bf16.gmra.mxu0 %v162
    %v227 = vpop.f32.mrf.mxu0
    %v228 = vadd.f32 %v54, %v227
    %v229 = vpop.f32.mrf.mxu0
    %v230 = vadd.f32 %v54, %v229
    %231 = vmatmul.bf16.gmra.mxu0 %v165
    %v232 = vpop.f32.mrf.mxu0
    %v233 = vadd.f32 %v54, %v232
    %v234 = vpop.f32.mrf.mxu0
    %v235 = vadd.f32 %v54, %v234
    %236 = vmatmul.bf16.gmra.mxu0 %v168
    %v237 = vpop.f32.mrf.mxu0
    %v238 = vadd.f32 %v54, %v237
    %v239 = vpop.f32.mrf.mxu0
    %v240 = vadd.f32 %v54, %v239
    %241 = vmatmul.bf16.gmra.mxu0 %v171
    %v242 = vpop.f32.mrf.mxu0
    %v243 = vadd.f32 %v54, %v242
    %v244 = vpop.f32.mrf.mxu0
    %v245 = vadd.f32 %v54, %v244
    %246 = vdwg.mxu0
    %vm247 = vcmp.ge.f32.partialorder %v183, 0.0
    %vm248 = vcmp.ge.f32.partialorder %v185, 0.0
    %vm249 = vcmp.ge.f32.partialorder %v188, 0.0
    %vm250 = vcmp.ge.f32.partialorder %v190, 0.0
    %vm251 = vcmp.ge.f32.partialorder %v193, 0.0
    %vm252 = vcmp.ge.f32.partialorder %v195, 0.0
    %vm253 = vcmp.ge.f32.partialorder %v198, 0.0
    %vm254 = vcmp.ge.f32.partialorder %v200, 0.0
    %vm255 = vcmp.ge.f32.partialorder %v203, 0.0
    %vm256 = vcmp.ge.f32.partialorder %v205, 0.0
    %vm257 = vcmp.ge.f32.partialorder %v208, 0.0
    %vm258 = vcmp.ge.f32.partialorder %v210, 0.0
    %vm259 = vcmp.ge.f32.partialorder %v213, 0.0
    %vm260 = vcmp.ge.f32.partialorder %v215, 0.0
    %vm261 = vcmp.ge.f32.partialorder %v218, 0.0
    %vm262 = vcmp.ge.f32.partialorder %v220, 0.0
    %vm263 = vcmp.ge.f32.partialorder %v223, 0.0
    %vm264 = vcmp.ge.f32.partialorder %v225, 0.0
    %vm265 = vcmp.ge.f32.partialorder %v228, 0.0
    %vm266 = vcmp.ge.f32.partialorder %v230, 0.0
    %vm267 = vcmp.ge.f32.partialorder %v233, 0.0
    %vm268 = vcmp.ge.f32.partialorder %v235, 0.0
    %vm269 = vcmp.ge.f32.partialorder %v238, 0.0
    %vm270 = vcmp.ge.f32.partialorder %v240, 0.0
    %vm271 = vcmp.ge.f32.partialorder %v243, 0.0
    %vm272 = vcmp.ge.f32.partialorder %v245, 0.0
    %v273 = vsel %vm247, 1.4142135, 0.28284273
    %v274 = vsel %vm248, 1.4142135, 0.28284273
    %v275 = vsel %vm249, 1.4142135, 0.28284273
    %v276 = vsel %vm250, 1.4142135, 0.28284273
    %v277 = vsel %vm251, 1.4142135, 0.28284273
    %v278 = vsel %vm252, 1.4142135, 0.28284273
    %v279 = vsel %vm253, 1.4142135, 0.28284273
    %v280 = vsel %vm254, 1.4142135, 0.28284273
    %v281 = vsel %vm255, 1.4142135, 0.28284273
    %v282 = vsel %vm256, 1.4142135, 0.28284273
    %v283 = vsel %vm257, 1.4142135, 0.28284273
    %v284 = vsel %vm258, 1.4142135, 0.28284273
    %v285 = vsel %vm259, 1.4142135, 0.28284273
    %v286 = vsel %vm260, 1.4142135, 0.28284273
    %v287 = vsel %vm261, 1.4142135, 0.28284273
    %v288 = vsel %vm262, 1.4142135, 0.28284273
    %v289 = vsel %vm263, 1.4142135, 0.28284273
    %v290 = vsel %vm264, 1.4142135, 0.28284273
    %v291 = vsel %vm265, 1.4142135, 0.28284273
    %v292 = vsel %vm266, 1.4142135, 0.28284273
    %v293 = vsel %vm267, 1.4142135, 0.28284273
    %v294 = vsel %vm268, 1.4142135, 0.28284273
    %v295 = vsel %vm269, 1.4142135, 0.28284273
    %v296 = vsel %vm270, 1.4142135, 0.28284273
    %v297 = vsel %vm271, 1.4142135, 0.28284273
    %v298 = vsel %vm272, 1.4142135, 0.28284273
    %v299 = vmul.f32 %v183, %v273
    %v300 = vmul.f32 %v185, %v274
    %v301 = vmul.f32 %v188, %v275
    %v302 = vmul.f32 %v190, %v276
    %v303 = vmul.f32 %v193, %v277
    %v304 = vmul.f32 %v195, %v278
    %v305 = vmul.f32 %v198, %v279
    %v306 = vmul.f32 %v200, %v280
    %v307 = vmul.f32 %v203, %v281
    %v308 = vmul.f32 %v205, %v282
    %v309 = vmul.f32 %v208, %v283
    %v310 = vmul.f32 %v210, %v284
    %v311 = vmul.f32 %v213, %v285
    %v312 = vmul.f32 %v215, %v286
    %v313 = vmul.f32 %v218, %v287
    %v314 = vmul.f32 %v220, %v288
    %v315 = vmul.f32 %v223, %v289
    %v316 = vmul.f32 %v225, %v290
    %v317 = vmul.f32 %v228, %v291
    %v318 = vmul.f32 %v230, %v292
    %v319 = vmul.f32 %v233, %v293
    %v320 = vmul.f32 %v235, %v294
    %v321 = vmul.f32 %v238, %v295
    %v322 = vmul.f32 %v240, %v296
    %v323 = vmul.f32 %v243, %v297
    %v324 = vmul.f32 %v245, %v298
    %v325 = vpack.c.bf16 %v300, %v299
    %v326 = vpack.c.bf16 %v302, %v301
    %v327 = vpack.c.bf16 %v304, %v303
    %v328 = vpack.c.bf16 %v306, %v305
    %v329 = vpack.c.bf16 %v308, %v307
    %v330 = vpack.c.bf16 %v310, %v309
    %v331 = vpack.c.bf16 %v312, %v311
    %v332 = vpack.c.bf16 %v314, %v313
    %v333 = vpack.c.bf16 %v316, %v315
    %v334 = vpack.c.bf16 %v318, %v317
    %v335 = vpack.c.bf16 %v320, %v319
    %v336 = vpack.c.bf16 %v322, %v321
    %v337 = vpack.c.bf16 %v324, %v323
    %v338 = vld [vmem:[%s3] sm:$0xf]
    %v339 = vld [vmem:[%s3 + $0x4] sm:$0xf]
    %v340 = vld [vmem:[%s3 + $0x8] sm:$0xf]
    %v341 = vld [vmem:[%s3 + $0xc] sm:$0xf]
    %v342 = vld [vmem:[%s3 + $0x10] sm:$0xf]
    %v343 = vld [vmem:[%s3 + $0x14] sm:$0xf]
    %v344 = vld [vmem:[%s3 + $0x18] sm:$0xf]
    %v345 = vld [vmem:[%s3 + $0x1c] sm:$0xf]
    %v346 = vld [vmem:[%s3 + $0x20] sm:$0xf]
    %v347 = vld [vmem:[%s3 + $0x24] sm:$0xf]
    %v348 = vld [vmem:[%s3 + $0x28] sm:$0xf]
    %v349 = vld [vmem:[%s3 + $0x2c] sm:$0xf]
    %v350 = vld [vmem:[%s3 + $0x30] sm:$0xf]
    %v351 = vld [vmem:[%s3 + $0x34] sm:$0xf]
    %v352 = vld [vmem:[%s3 + $0x38] sm:$0xf]
    %v353 = vld [vmem:[%s3 + $0x3c] sm:$0xf]
    %v354 = vld [vmem:[%s4] sm:$0x1]
    %v356 = vperm.slane %v354, 0
    %v374 = vunpack.c.l.b16 %v338
    %v375 = vunpack.c.l.b16 %v339
    %v376 = vunpack.c.l.b16 %v340
    %v377 = vunpack.c.l.b16 %v341
    %v378 = vunpack.c.l.b16 %v342
    %v379 = vunpack.c.l.b16 %v343
    %v380 = vunpack.c.l.b16 %v344
    %v381 = vunpack.c.l.b16 %v345
    %v382 = vunpack.c.l.b16 %v346
    %v383 = vunpack.c.l.b16 %v347
    %v384 = vunpack.c.l.b16 %v348
    %v385 = vunpack.c.l.b16 %v349
    %v386 = vunpack.c.l.b16 %v350
    %v387 = vunpack.c.l.b16 %v351
    %v388 = vunpack.c.l.b16 %v352
    %v389 = vunpack.c.l.b16 %v353
    %v390 = vpack.c.b16 %v375, %v374
    %v391 = vpack.c.b16 %v377, %v376
    %v392 = vpack.c.b16 %v379, %v378
    %v393 = vpack.c.b16 %v381, %v380
    %v394 = vpack.c.b16 %v383, %v382
    %v395 = vpack.c.b16 %v385, %v384
    %v396 = vpack.c.b16 %v387, %v386
    %v397 = vpack.c.b16 %v389, %v388
    %406 = vmatpush.bf16.msra.mxu0 %v397
    %407 = vmatpush.bf16.msra.mxu0 %v396
    %408 = vmatpush.bf16.msra.mxu0 %v395
    %409 = vmatpush.bf16.msra.mxu0 %v394
    %410 = vmatpush.bf16.msra.mxu0 %v393
    %411 = vmatpush.bf16.msra.mxu0 %v392
    %412 = vmatpush.bf16.msra.mxu0 %v391
    %413 = vmatpush.bf16.msra.mxu0 %v390
    %414 = vmatmul.bf16.gmra.mxu0 %v325
    %v415 = vpop.f32.mrf.mxu0
    %v416 = vadd.f32 %v356, %v415
    %v417 = vpop.f32.mrf.mxu0
    %v418 = vadd.f32 %v356, %v417
    %419 = vmatmul.bf16.gmra.mxu0 %v326
    %v420 = vpop.f32.mrf.mxu0
    %v421 = vadd.f32 %v356, %v420
    %v422 = vpop.f32.mrf.mxu0
    %v423 = vadd.f32 %v356, %v422
    %424 = vmatmul.bf16.gmra.mxu0 %v327
    %v425 = vpop.f32.mrf.mxu0
    %v426 = vadd.f32 %v356, %v425
    %v427 = vpop.f32.mrf.mxu0
    %v428 = vadd.f32 %v356, %v427
    %429 = vmatmul.bf16.gmra.mxu0 %v328
    %v430 = vpop.f32.mrf.mxu0
    %v431 = vadd.f32 %v356, %v430
    %v432 = vpop.f32.mrf.mxu0
    %v433 = vadd.f32 %v356, %v432
    %434 = vmatmul.bf16.gmra.mxu0 %v329
    %v435 = vpop.f32.mrf.mxu0
    %v436 = vadd.f32 %v356, %v435
    %v437 = vpop.f32.mrf.mxu0
    %v438 = vadd.f32 %v356, %v437
    %439 = vmatmul.bf16.gmra.mxu0 %v330
    %v440 = vpop.f32.mrf.mxu0
    %v441 = vadd.f32 %v356, %v440
    %v442 = vpop.f32.mrf.mxu0
    %v443 = vadd.f32 %v356, %v442
    %444 = vmatmul.bf16.gmra.mxu0 %v331
    %v445 = vpop.f32.mrf.mxu0
    %v446 = vadd.f32 %v356, %v445
    %v447 = vpop.f32.mrf.mxu0
    %v448 = vadd.f32 %v356, %v447
    %449 = vmatmul.bf16.gmra.mxu0 %v332
    %v450 = vpop.f32.mrf.mxu0
    %v451 = vadd.f32 %v356, %v450
    %v452 = vpop.f32.mrf.mxu0
    %v453 = vadd.f32 %v356, %v452
    %454 = vmatmul.bf16.gmra.mxu0 %v333
    %v455 = vpop.f32.mrf.mxu0
    %v456 = vadd.f32 %v356, %v455
    %v457 = vpop.f32.mrf.mxu0
    %v458 = vadd.f32 %v356, %v457
    %459 = vmatmul.bf16.gmra.mxu0 %v334
    %v460 = vpop.f32.mrf.mxu0
    %v461 = vadd.f32 %v356, %v460
    %v462 = vpop.f32.mrf.mxu0
    %v463 = vadd.f32 %v356, %v462
    %464 = vmatmul.bf16.gmra.mxu0 %v335
    %v465 = vpop.f32.mrf.mxu0
    %v466 = vadd.f32 %v356, %v465
    %v467 = vpop.f32.mrf.mxu0
    %v468 = vadd.f32 %v356, %v467
    %469 = vmatmul.bf16.gmra.mxu0 %v336
    %v470 = vpop.f32.mrf.mxu0
    %v471 = vadd.f32 %v356, %v470
    %v472 = vpop.f32.mrf.mxu0
    %v473 = vadd.f32 %v356, %v472
    %474 = vmatmul.bf16.gmra.mxu0 %v337
    %v475 = vpop.f32.mrf.mxu0
    %v476 = vadd.f32 %v356, %v475
    %v477 = vpop.f32.mrf.mxu0
    %v478 = vadd.f32 %v356, %v477
    %479 = vdwg.mxu0
    %480 = vst [vmem:[#allocation2] sm:$0xff] %v416
    %481 = vst [vmem:[#allocation2 + $0x8] sm:$0xff] %v418
    %482 = vst [vmem:[#allocation2 + $0x10] sm:$0xff] %v421
    %483 = vst [vmem:[#allocation2 + $0x18] sm:$0xff] %v423
    %484 = vst [vmem:[#allocation2 + $0x20] sm:$0xff] %v426
    %485 = vst [vmem:[#allocation2 + $0x28] sm:$0xff] %v428
    %486 = vst [vmem:[#allocation2 + $0x30] sm:$0xff] %v431
    %487 = vst [vmem:[#allocation2 + $0x38] sm:$0xff] %v433
    %488 = vst [vmem:[#allocation2 + $0x40] sm:$0xff] %v436
    %489 = vst [vmem:[#allocation2 + $0x48] sm:$0xff] %v438
    %490 = vst [vmem:[#allocation2 + $0x50] sm:$0xff] %v441
    %491 = vst [vmem:[#allocation2 + $0x58] sm:$0xff] %v443
    %492 = vst [vmem:[#allocation2 + $0x60] sm:$0xff] %v446
    %493 = vst [vmem:[#allocation2 + $0x68] sm:$0xff] %v448
    %494 = vst [vmem:[#allocation2 + $0x70] sm:$0xff] %v451
    %495 = vst [vmem:[#allocation2 + $0x78] sm:$0xff] %v453
    %496 = vst [vmem:[#allocation2 + $0x80] sm:$0xff] %v456
    %497 = vst [vmem:[#allocation2 + $0x88] sm:$0xff] %v458
    %498 = vst [vmem:[#allocation2 + $0x90] sm:$0xff] %v461
    %499 = vst [vmem:[#allocation2 + $0x98] sm:$0xff] %v463
    %500 = vst [vmem:[#allocation2 + $0xa0] sm:$0xff] %v466
    %501 = vst [vmem:[#allocation2 + $0xa8] sm:$0xff] %v468
    %502 = vst [vmem:[#allocation2 + $0xb0] sm:$0xff] %v471
    %503 = vst [vmem:[#allocation2 + $0xb8] sm:$0xff] %v473
    %504 = vst [vmem:[#allocation2 + $0xc0] sm:$0xff] %v476
    %505 = vst [vmem:[#allocation2 + $0xc8] sm:$0xff] %v478
    // Predicated region
    $region22: #{tpu_custom_call.1} parent=1 // pred_check
      _
    $region23: #{tpu_custom_call.1} parent=1 // pred_check_branch
      %507 = sbr.rel (0) target = $region25
    $region24: #{tpu_custom_call.1} parent=1 // pred_region
      %509 = vsyncadd [#allocation3], 0
      %s510 = sshll.u32 [#allocation2], 4
      %s511 = int_to_ptr.vmem [resolvable:$true] %s510
      %s512 = sshll.u32 %s5, 4
      %s513 = int_to_ptr.hbm [resolvable:$true] %s512
      %518 = dma.vmem_to_hbm [thread:$0]  %s511, 3328, %s513, [#allocation3], 128, 128, 8
    $region25: #{tpu_custom_call.1} parent=1 // pred_fallthru
      _
    // Predicated region
    $region26: #{tpu_custom_call.1} parent=1 // pred_check
      _
    $region27: #{tpu_custom_call.1} parent=1 // pred_check_branch
      %520 = sbr.rel (0) target = $region29
    $region28: #{tpu_custom_call.1} parent=1 // pred_region
      %522 = dma.done [#allocation3], 3328
    $region29: #{tpu_custom_call.1} parent=1 // pred_fallthru
      _
    %523 = vsyncpa [#allocation3], 1

</llo_original>
